<compile_context>
chip_gen: v7x
topology: tpu7x:2x2x1
jax: 0.10.0
libtpu: 0.0.40
codegen_flags: <defaults>
</compile_context>

<pallas_src>
import functools

import jax
import jax.numpy as jnp
from jax.experimental import pallas as pl
from jax.experimental.pallas import tpu as pltpu


def scaling_kernel(scale_ref, x_ref, o_ref):
    # scale_ref: (Rb, 1) or (1, Tb) float32; x_ref / o_ref: (Rb, Tb) in x dtype.
    # Pure VPU splat-multiply; compute in f32, single rounding at the output.
    s = scale_ref[...]
    x = x_ref[...].astype(jnp.float32)
    o_ref[...] = (s * x).astype(o_ref.dtype)


def _round_up(n, m):
    return ((n + m - 1) // m) * m


def _largest_aligned_divisor(n, unit, cap):
    """Largest multiple of `unit` dividing `n`, bounded by cap (caller ensures n % unit == 0)."""
    best = unit
    d = unit
    limit = min(n, max(cap, unit))
    while d <= limit:
        if n % d == 0:
            best = d
        d += unit
    return best


def _choose_tiles(rows, cols, sub, itemsize, target_bytes):
    """Pick (Rb, Tb) for a (rows, cols) array (cols % 128 == 0), ~target_bytes blocks."""
    row_aligned = (rows % sub == 0)
    min_rb = sub if row_aligned else rows  # full-extent row block is always legal
    if min_rb * cols * itemsize <= target_bytes:
        # Whole lane extent per block (fully contiguous DMA per row); grow rows.
        Tb = cols
        if row_aligned:
            Rb = _largest_aligned_divisor(rows, sub, target_bytes // (cols * itemsize))
        else:
            Rb = rows
    else:
        Rb = min_rb
        Tb = _largest_aligned_divisor(cols, 128, target_bytes // (Rb * itemsize))
    return Rb, Tb


@functools.partial(jax.jit, static_argnames=("target_block_bytes",))
def scaling_factor(x, scale, *, target_block_bytes=4 * 1024 * 1024):
    """x: (N, C, H, W), scale: (1, C, 1, 1). Returns scale * x (dtype of x)."""
    N, C, H, W = x.shape
    assert scale.shape == (1, C, 1, 1)
    HW = H * W

    itemsize = jnp.dtype(x.dtype).itemsize
    sub = max(8, 32 // itemsize)  # sublane pack: 8 (f32), 16 (bf16), 32 (int8)
    scale_col = scale.reshape(C, 1).astype(jnp.float32)

    if HW >= 128 or HW % 128 == 0:
        # Fold batch and channel into one row axis; per-row scale vector.
        rows, cols = N * C, HW
        x2 = x.reshape(rows, cols)
        svec = jnp.tile(scale_col, (N, 1))                       # (N*C, 1)
        per_row_scale = True
    else:
        # Tiny feature maps: keep the lane axis wide by flattening C*HW and
        # pre-broadcasting the scale per element (only C*HW f32, VMEM-resident).
        rows, cols = N, C * HW
        x2 = x.reshape(rows, cols)
        svec = jnp.broadcast_to(scale_col, (C, HW)).reshape(1, cols)
        per_row_scale = False

    # Lane padding: keep the last axis a multiple of 128 (unmasked vst, and a
    # bounded VMEM footprint even for e.g. 250x250 maps).  No-op when aligned.
    cols_p = _round_up(cols, 128)
    if cols_p != cols:
        x2 = jnp.pad(x2, ((0, 0), (0, cols_p - cols)))
        if not per_row_scale:
            svec = jnp.pad(svec, ((0, 0), (0, cols_p - cols)))

    # Row padding only when a full-extent row block would blow the block budget.
    rows_p = rows
    if rows % sub != 0 and rows * 128 * itemsize > target_block_bytes:
        rows_p = _round_up(rows, sub)
        x2 = jnp.pad(x2, ((0, rows_p - rows), (0, 0)))
        if per_row_scale:
            svec = jnp.pad(svec, ((0, rows_p - rows), (0, 0)))

    Rb, Tb = _choose_tiles(rows_p, cols_p, sub, itemsize, target_block_bytes)
    grid = (rows_p // Rb, cols_p // Tb)

    if per_row_scale:
        # (Rb, 1) block; ignores the spatial grid axis -> stays resident across it.
        scale_spec = pl.BlockSpec((Rb, 1), lambda r, s: (r, 0))
    else:
        # (1, Tb) broadcast-row block.
        scale_spec = pl.BlockSpec((1, Tb), lambda r, s: (0, s))

    grid_spec = pltpu.PrefetchScalarGridSpec(
        num_scalar_prefetch=0,
        grid=grid,
        in_specs=[
            scale_spec,
            pl.BlockSpec((Rb, Tb), lambda r, s: (r, s)),
        ],
        out_specs=pl.BlockSpec((Rb, Tb), lambda r, s: (r, s)),
    )

    out2 = pl.pallas_call(
        scaling_kernel,
        out_shape=jax.ShapeDtypeStruct((rows_p, cols_p), x.dtype),
        grid_spec=grid_spec,
        compiler_params=pltpu.CompilerParams(
            dimension_semantics=("parallel", "parallel"),
            # 48 MiB: safely below v7x's 64 MiB physical VMEM, a big upgrade
            # over v5e's 16 MiB scoped default, trivially fine on v6e.
            vmem_limit_bytes=48 * 1024 * 1024,
        ),
    )(svec, x2)

    if (rows_p, cols_p) != (rows, cols):
        out2 = out2[:rows, :cols]
    return out2.reshape(N, C, H, W)


if __name__ == "__main__":
    key = jax.random.PRNGKey(0)
    kx, ks, kx2, ks2, kx3, ks3, kx4, ks4 = jax.random.split(key, 8)

    # Small shape consistent with the module (batch=2, channels=4, spatial=16).
    N, C, H, W = 2, 4, 16, 16
    x = jax.random.normal(kx, (N, C, H, W), dtype=jnp.float32)

    # PyTorch init is zeros; also a random scale to exercise the broadcast path.
    scale_zero = jnp.zeros((1, C, 1, 1), dtype=jnp.float32)
    scale_rand = jax.random.normal(ks, (1, C, 1, 1), dtype=jnp.float32)

    out_zero = jax.block_until_ready(scaling_factor(x, scale_zero))
    out_rand = jax.block_until_ready(scaling_factor(x, scale_rand))
    assert out_zero.shape == x.shape and out_zero.dtype == x.dtype
    assert jnp.allclose(out_zero, scale_zero * x, atol=1e-6)
    assert jnp.allclose(out_rand, scale_rand * x, atol=1e-6)

    # Row-folded tiling path (N*C rows, HW a multiple of 128).
    N2, C2, H2, W2 = 2, 128, 32, 32
    x2 = jax.random.normal(kx2, (N2, C2, H2, W2), dtype=jnp.float32)
    scale2 = jax.random.normal(ks2, (1, C2, 1, 1), dtype=jnp.float32)
    out2 = jax.block_until_ready(scaling_factor(x2, scale2))
    assert jnp.allclose(out2, scale2 * x2, atol=1e-6)

    # Small-feature-map path (HW < 128 -> pre-broadcast scale, C*HW on lanes).
    N3, C3, H3, W3 = 2, 8, 7, 7
    x3 = jax.random.normal(kx3, (N3, C3, H3, W3), dtype=jnp.float32)
    scale3 = jax.random.normal(ks3, (1, C3, 1, 1), dtype=jnp.float32)
    out3 = jax.block_until_ready(scaling_factor(x3, scale3))
    assert jnp.allclose(out3, scale3 * x3, atol=1e-6)

    # Lane-padding path (HW >= 128 but not a multiple of 128).
    N4, C4, H4, W4 = 2, 8, 10, 15
    x4 = jax.random.normal(kx4, (N4, C4, H4, W4), dtype=jnp.float32)
    scale4 = jax.random.normal(ks4, (1, C4, 1, 1), dtype=jnp.float32)
    out4 = jax.block_until_ready(scaling_factor(x4, scale4))
    assert jnp.allclose(out4, scale4 * x4, atol=1e-6)

    print("KERNEL_OK")
</pallas_src>

<mosaic_0001>
module attributes {stable_mosaic.version = 11 : i64} {
  func.func @scaling_kernel(%arg0: i32, %arg1: i32, %arg2: memref<8x1xf32, #tpu.memory_space<vmem>>, %arg3: memref<8x256xf32, #tpu.memory_space<vmem>>, %arg4: memref<8x256xf32, #tpu.memory_space<vmem>>) attributes {dimension_semantics = [#tpu.dimension_semantics<parallel>, #tpu.dimension_semantics<parallel>], iteration_bounds = array<i64: 1, 1>, scalar_prefetch = 0 : i64, scratch_operands = 0 : i64, tpu.core_type = #tpu.core_type<tc>, window_params = [{transform_indices = @transform_0, window_bounds = array<i64: 8, 1>}, {transform_indices = @transform_1, window_bounds = array<i64: 8, 256>}, {transform_indices = @transform_2, window_bounds = array<i64: 8, 256>}]} {
    %c0 = arith.constant 0 : index
    %c0_0 = arith.constant 0 : index
    %0 = vector.load %arg2[%c0, %c0_0] : memref<8x1xf32, #tpu.memory_space<vmem>>, vector<8x1xf32>
    %c0_1 = arith.constant 0 : index
    %c0_2 = arith.constant 0 : index
    %1 = vector.load %arg3[%c0_1, %c0_2] : memref<8x256xf32, #tpu.memory_space<vmem>>, vector<8x256xf32>
    %2 = vector.broadcast %0 : vector<8x1xf32> to vector<8x256xf32>
    %3 = arith.mulf %2, %1 : vector<8x256xf32>
    %c0_3 = arith.constant 0 : index
    %c0_4 = arith.constant 0 : index
    %4 = vector.load %arg4[%c0_3, %c0_4] : memref<8x256xf32, #tpu.memory_space<vmem>>, vector<8x256xf32>
    tpu.vector_store %arg4[%c0_3, %c0_4], %3 {strides = array<i32>} : memref<8x256xf32, #tpu.memory_space<vmem>>, vector<8x256xf32>,
    return
  }
  func.func @transform_0(%arg0: i32, %arg1: i32) -> (i32, i32) {
    %c0_i32 = arith.constant 0 : i32
    %c0_i32_0 = arith.constant 0 : i32
    return %arg0, %c0_i32 : i32, i32
  }
  func.func @transform_1(%arg0: i32, %arg1: i32) -> (i32, i32) {
    %c0_i32 = arith.constant 0 : i32
    return %arg0, %arg1 : i32, i32
  }
  func.func @transform_2(%arg0: i32, %arg1: i32) -> (i32, i32) {
    %c0_i32 = arith.constant 0 : i32
    return %arg0, %arg1 : i32, i32
  }
}

</mosaic_0001>

<llo_original>
// kernel: scaling_factor.1
$region0: #{scaling_factor.1}
  #allocation0 [shape = 'u32[]', space=smem, size = 0x4, offset = 0x4, fixed_abs, tag = 'smem constant byte address 0x4 - core index']
  #allocation1 [shape = 'u32[144,128]{1,0:T(1,128)}', space=vmem, size = 0x12000, scoped, tag = 'internal scratch']
  %s0 = inlined_call_operand.vmem [shape: f32[8,1], index: 0, kind: input, shape index: {}]
  %s1 = inlined_call_operand.vmem [shape: f32[8,256], index: 1, kind: input, shape index: {}]
  %s2 = inlined_call_operand.vmem [shape: f32[8,256], index: 2, kind: output, shape index: {}]
  %s3 = sld [smem:[#allocation0]]
  $region18: #{scaling_factor.1} parent=0
    _
  %s5 = ssub.s32 1, %s3
  %s6 = scalar_select 0, %s5, %s3
  // Predicated region
  $region2: #{scaling_factor.1} parent=0 // pred_check
    _
  $region3: #{scaling_factor.1} parent=0 // pred_check_branch
    %8 = sbr.rel (0) target = $region5
  $region4: #{scaling_factor.1} parent=0 // pred_region
    _
  $region5: #{scaling_factor.1} parent=0 // pred_fallthru
    _
  // Predicated region
  $region6: #{scaling_factor.1} parent=0 // pred_check
    _
  $region7: #{scaling_factor.1} parent=0 // pred_check_branch
    %10 = sbr.rel (0) target = $region9
  $region8: #{scaling_factor.1} parent=0 // pred_region
    _
  $region9: #{scaling_factor.1} parent=0 // pred_fallthru
    _
  %v11 = vld [vmem:[%s0] sm:$0xff]
  %v12 = vld [vmem:[%s1] sm:$0xff]
  %v13 = vld [vmem:[%s1 + $0x8] sm:$0xff]
  %15 = vset.pattern.permute.xlu0 0
  %16 = vperm.xlu0 %15, %v11
  %v17 = vpop.permute.xlu0 %16
  %v19 = vmul.f32 %v17, %v12
  %v20 = vmul.f32 %v17, %v13
  %21 = vst [vmem:[%s2] sm:$0xff] %v19
  %22 = vst [vmem:[%s2 + $0x8] sm:$0xff] %v20
  // Predicated region
  $region10: #{scaling_factor.1} parent=0 // pred_check
    _
  $region11: #{scaling_factor.1} parent=0 // pred_check_branch
    %24 = sbr.rel (0) target = $region13
  $region12: #{scaling_factor.1} parent=0 // pred_region
    _
  $region13: #{scaling_factor.1} parent=0 // pred_fallthru
    _
  // Predicated region
  $region14: #{scaling_factor.1} parent=0 // pred_check
    _
  $region15: #{scaling_factor.1} parent=0 // pred_check_branch
    %26 = sbr.rel (0) target = $region17
  $region16: #{scaling_factor.1} parent=0 // pred_region
    _
  $region17: #{scaling_factor.1} parent=0 // pred_fallthru
    _

</llo_original>
